<compile_context>
chip_gen: v7x
topology: tpu7x:2x2x1
jax: 0.10.0
libtpu: 0.0.40
codegen_flags: <defaults>
</compile_context>

<pallas_src>
import jax
import jax.numpy as jnp
from jax.experimental import pallas as pl
from jax.experimental.pallas import tpu as pltpu

LANES = 128
SUBLANES = 8
BASE = SUBLANES * LANES            # bulk alignment: 1024 elements
ROW_ALIGN = 32                     # safe sublane packing for f32/bf16/int8 tiles
TILE_BYTES_PER_INPUT = 4 << 20     # ~4 MiB per input tile (per buffer)
VMEM_LIMIT_BYTES = 40 << 20        # inputs double-buffered <= 16 MiB; headroom
NCORES_MAX = 2


def _num_tensorcores():
    """Best-effort: 2 on dual-TensorCore chips (v7x / v4 / v5p), else 1.

    A wrong answer only affects performance, never correctness: ncores=2 on a
    1-TC chip just serializes the core axis; ncores=1 on a 2-TC chip leaves a
    core idle.
    """
    try:
        kind = jax.devices()[0].device_kind.lower()
    except Exception:
        kind = ""
    if any(tag in kind for tag in ("v7", "7x", "ironwood", "v4", "v5p")):
        return NCORES_MAX
    return 1


def _make_dice_kernel(tile_rows, rows_total, steps_per_core, needs_mask, split_cores):
    n_chunks = tile_rows // SUBLANES
    unroll = max(1, min(8, n_chunks))

    def kernel(p_ref, t_ref, out_ref):
        if split_cores:
            c = pl.program_id(0)          # parallel (core) axis
            j = pl.program_id(1)          # reduction axis (sequential per core)
            block_idx = c * steps_per_core + j   # logical (unclamped) block index
        else:
            j = pl.program_id(0)
            block_idx = j

        @pl.when(j == 0)
        def _init():
            out_ref[...] = jnp.zeros_like(out_ref)

        def accumulate(masked):
            def body(i, carry):
                acc_i, acc_d = carry
                r = pl.multiple_of(i * SUBLANES, SUBLANES)
                p = p_ref[pl.ds(r, SUBLANES), :].astype(jnp.float32)
                t = t_ref[pl.ds(r, SUBLANES), :].astype(jnp.float32)
                if masked:
                    # Zero rows beyond the logical end of the data: covers both
                    # the partial last block (clipped edge DMA leaves the buffer
                    # tail undefined) and the clamped duplicate overrun block.
                    row0 = block_idx * tile_rows + r
                    row_ids = row0 + jax.lax.broadcasted_iota(
                        jnp.int32, (SUBLANES, LANES), 0)
                    valid = row_ids < rows_total
                    p = jnp.where(valid, p, 0.0)
                    t = jnp.where(valid, t, 0.0)
                return acc_i + p * t, acc_d + (p + t)

            zeros = jnp.zeros((SUBLANES, LANES), jnp.float32)
            acc_i, acc_d = jax.lax.fori_loop(
                0, n_chunks, body, (zeros, zeros), unroll=unroll)
            out_ref[0, :, :] = out_ref[0, :, :] + acc_i   # intersection partials
            out_ref[1, :, :] = out_ref[1, :, :] + acc_d   # sum(p)+sum(t) partials

        if needs_mask:
            # Only the partial last block / duplicate overrun block pays for
            # the per-element mask; full blocks take the pure streaming path.
            is_full = (block_idx + 1) * tile_rows <= rows_total
            is_edge = (block_idx + 1) * tile_rows > rows_total

            @pl.when(is_full)
            def _fast():
                accumulate(False)

            @pl.when(is_edge)
            def _masked():
                accumulate(True)
        else:
            accumulate(False)

    return kernel


def _dice_sums(p_flat, t_flat):
    """Returns (intersection, sum(preds)+sum(targets)) as f32 scalars."""
    n = p_flat.shape[0]
    n_bulk = (n // BASE) * BASE

    inter = jnp.zeros((), jnp.float32)
    denom = jnp.zeros((), jnp.float32)

    if n_bulk > 0:
        rows = n_bulk // LANES                              # multiple of 8
        itemsize = max(jnp.dtype(p_flat.dtype).itemsize,
                       jnp.dtype(t_flat.dtype).itemsize)
        # Dtype-aware tile: ~4 MiB per input per buffer, rows multiple of 32.
        budget_rows = TILE_BYTES_PER_INPUT // (LANES * itemsize)
        budget_rows = max(ROW_ALIGN, (budget_rows // ROW_ALIGN) * ROW_ALIGN)
        tile_rows = rows if rows <= budget_rows else budget_rows

        total_blocks = pl.cdiv(rows, tile_rows)
        ncores = _num_tensorcores()
        ncores = ncores if (ncores > 1 and total_blocks >= ncores) else 1
        steps = pl.cdiv(total_blocks, ncores)
        overrun = ncores * steps > total_blocks
        needs_mask = (ncores * steps * tile_rows) != rows

        # Contiguous prefix + reshape: free when n is already aligned.
        p2 = p_flat[:n_bulk].reshape(rows, LANES)
        t2 = t_flat[:n_bulk].reshape(rows, LANES)

        if ncores == 1:
            grid = (steps,)
            in_map = lambda j: (j, 0)
            out_map = lambda j: (0, 0, 0)
            dims = ("arbitrary",)
        else:
            grid = (ncores, steps)

            def in_map(c, j):
                b = c * steps + j
                if overrun:
                    # Keep the DMA in bounds; the in-kernel mask zeroes the
                    # duplicate block's contribution.
                    b = jnp.minimum(b, total_blocks - 1)
                return (b, 0)

            out_map = lambda c, j: (c, 0, 0)
            # Leading axis of size num_cores marked parallel -> sharded across
            # TensorCores on dual-TC chips; reduction axis stays sequential.
            dims = ("parallel", "arbitrary")

        kernel = _make_dice_kernel(tile_rows, rows, steps, needs_mask, ncores > 1)
        partials = pl.pallas_call(
            kernel,
            out_shape=jax.ShapeDtypeStruct((ncores * 2, SUBLANES, LANES), jnp.float32),
            grid_spec=pltpu.PrefetchScalarGridSpec(
                num_scalar_prefetch=0,
                grid=grid,
                in_specs=[pl.BlockSpec((tile_rows, LANES), in_map),
                          pl.BlockSpec((tile_rows, LANES), in_map)],
                out_specs=pl.BlockSpec((2, SUBLANES, LANES), out_map),
            ),
            compiler_params=pltpu.CompilerParams(
                dimension_semantics=dims,
                vmem_limit_bytes=VMEM_LIMIT_BYTES),
        )(p2, t2)

        sums = jnp.sum(partials.reshape(ncores, 2, SUBLANES, LANES), axis=(0, 2, 3))
        inter = sums[0]
        denom = sums[1]

    if n_bulk < n:
        # Sub-1024-element tail: negligible, handled in plain JAX (no pad copy).
        pt = p_flat[n_bulk:].astype(jnp.float32)
        tt = t_flat[n_bulk:].astype(jnp.float32)
        inter = inter + jnp.sum(pt * tt)
        denom = denom + jnp.sum(pt) + jnp.sum(tt)

    return inter, denom


@jax.jit
def dice_loss(preds, targets, smooth=1.0):
    """Matches torch DiceLoss.forward: flatten, reduce, 1 - dice."""
    p_flat = preds.reshape(-1)
    t_flat = targets.reshape(-1)
    intersection, denom = _dice_sums(p_flat, t_flat)
    dice = (2.0 * intersection + smooth) / (denom + smooth)
    return 1.0 - dice


if __name__ == "__main__":
    key = jax.random.PRNGKey(0)
    k1, k2, k3, k4 = jax.random.split(key, 4)

    def reference(p, t, smooth=1.0):
        pf = p.reshape(-1).astype(jnp.float32)
        tf = t.reshape(-1).astype(jnp.float32)
        inter = jnp.sum(pf * tf)
        return 1.0 - (2.0 * inter + smooth) / (jnp.sum(pf) + jnp.sum(tf) + smooth)

    # Small NCHW-like case (single block, unmasked fast path).
    preds = jax.nn.sigmoid(jax.random.normal(k1, (2, 4, 16, 16), dtype=jnp.float32))
    targets = (jax.random.uniform(k2, (2, 4, 16, 16)) > 0.5).astype(jnp.float32)
    loss = dice_loss(preds, targets)
    jax.block_until_ready(loss)
    ref = reference(preds, targets)
    assert jnp.allclose(loss, ref, atol=1e-5, rtol=1e-5), (loss, ref)

    # Larger, unaligned case: multi-block grid, masked partial last block,
    # core split on dual-TC chips, and a plain-JAX tail.
    preds_b = jax.nn.sigmoid(jax.random.normal(k3, (2, 4, 363, 365), dtype=jnp.float32))
    targets_b = (jax.random.uniform(k4, (2, 4, 363, 365)) > 0.5).astype(jnp.float32)
    loss_b = dice_loss(preds_b, targets_b)
    jax.block_until_ready(loss_b)
    ref_b = reference(preds_b, targets_b)
    assert jnp.allclose(loss_b, ref_b, atol=2e-4, rtol=2e-4), (loss_b, ref_b)

    print("KERNEL_OK")
</pallas_src>

<mosaic_0001>
module attributes {stable_mosaic.version = 11 : i64} {
  func.func @kernel(%arg0: i32, %arg1: memref<16x128xf32, #tpu.memory_space<vmem>>, %arg2: memref<16x128xf32, #tpu.memory_space<vmem>>, %arg3: memref<2x8x128xf32, #tpu.memory_space<vmem>>) attributes {dimension_semantics = [#tpu.dimension_semantics<arbitrary>], iteration_bounds = array<i64: 1>, scalar_prefetch = 0 : i64, scratch_operands = 0 : i64, tpu.core_type = #tpu.core_type<tc>, window_params = [{transform_indices = @transform_0, window_bounds = array<i64: 16, 128>}, {transform_indices = @transform_1, window_bounds = array<i64: 16, 128>}, {pipeline_mode = #tpu.pipeline_mode<synchronous>, transform_indices = @transform_2, window_bounds = array<i64: 2, 8, 128>}]} {
    %c0_i32 = arith.constant 0 : i32
    %0 = arith.cmpi eq, %arg0, %c0_i32 : i32
    %1 = arith.extui %0 : i1 to i32
    %c0_i32_0 = arith.constant 0 : i32
    %2 = arith.cmpi ne, %1, %c0_i32_0 : i32
    scf.if %2 {
      %cst_17 = arith.constant 0.000000e+00 : f32
      %36 = vector.broadcast %cst_17 : f32 to vector<2x8x128xf32>
      %c0_18 = arith.constant 0 : index
      %c0_19 = arith.constant 0 : index
      %c0_20 = arith.constant 0 : index
      %37 = vector.load %arg3[%c0_18, %c0_19, %c0_20] : memref<2x8x128xf32, #tpu.memory_space<vmem>>, vector<2x8x128xf32>
      tpu.vector_store %arg3[%c0_18, %c0_19, %c0_20], %36 {strides = array<i32>} : memref<2x8x128xf32, #tpu.memory_space<vmem>>, vector<2x8x128xf32>,
    } else {
    }
    %cst = arith.constant 0.000000e+00 : f32
    %3 = vector.broadcast %cst : f32 to vector<8x128xf32>
    %c0_i32_1 = arith.constant 0 : i32
    %c8_i32 = arith.constant 8 : i32
    %4 = arith.muli %c0_i32_1, %c8_i32 : i32
    %5 = tpu.assume_multiple %4, 8 : i32
    %6 = arith.index_cast %5 : i32 to index
    %c0 = arith.constant 0 : index
    %7 = vector.load %arg1[%6, %c0] : memref<16x128xf32, #tpu.memory_space<vmem>>, vector<8x128xf32>
    %8 = arith.index_cast %5 : i32 to index
    %c0_2 = arith.constant 0 : index
    %9 = vector.load %arg2[%8, %c0_2] : memref<16x128xf32, #tpu.memory_space<vmem>>, vector<8x128xf32>
    %10 = arith.mulf %7, %9 : vector<8x128xf32>
    %11 = arith.addf %3, %10 : vector<8x128xf32>
    %12 = arith.addf %7, %9 : vector<8x128xf32>
    %13 = arith.addf %3, %12 : vector<8x128xf32>
    %c1_i32 = arith.constant 1 : i32
    %c8_i32_3 = arith.constant 8 : i32
    %14 = arith.muli %c1_i32, %c8_i32_3 : i32
    %15 = tpu.assume_multiple %14, 8 : i32
    %16 = arith.index_cast %15 : i32 to index
    %c0_4 = arith.constant 0 : index
    %17 = vector.load %arg1[%16, %c0_4] : memref<16x128xf32, #tpu.memory_space<vmem>>, vector<8x128xf32>
    %18 = arith.index_cast %15 : i32 to index
    %c0_5 = arith.constant 0 : index
    %19 = vector.load %arg2[%18, %c0_5] : memref<16x128xf32, #tpu.memory_space<vmem>>, vector<8x128xf32>
    %20 = arith.mulf %17, %19 : vector<8x128xf32>
    %21 = arith.addf %11, %20 : vector<8x128xf32>
    %22 = arith.addf %17, %19 : vector<8x128xf32>
    %23 = arith.addf %13, %22 : vector<8x128xf32>
    %c2_i32 = arith.constant 2 : i32
    %c0_6 = arith.constant 0 : index
    %c0_7 = arith.constant 0 : index
    %c0_8 = arith.constant 0 : index
    %24 = vector.load %arg3[%c0_6, %c0_7, %c0_8] : memref<2x8x128xf32, #tpu.memory_space<vmem>>, vector<1x8x128xf32>
    %25 = vector.shape_cast %24 : vector<1x8x128xf32> to vector<8x128xf32>
    %26 = arith.addf %25, %21 : vector<8x128xf32>
    %c0_9 = arith.constant 0 : index
    %c0_10 = arith.constant 0 : index
    %c0_11 = arith.constant 0 : index
    %27 = vector.load %arg3[%c0_9, %c0_10, %c0_11] : memref<2x8x128xf32, #tpu.memory_space<vmem>>, vector<1x8x128xf32>
    %28 = vector.shape_cast %27 : vector<1x8x128xf32> to vector<8x128xf32>
    %29 = vector.shape_cast %26 : vector<8x128xf32> to vector<1x8x128xf32>
    tpu.vector_store %arg3[%c0_9, %c0_10, %c0_11], %29 {strides = array<i32>} : memref<2x8x128xf32, #tpu.memory_space<vmem>>, vector<1x8x128xf32>,
    %c1 = arith.constant 1 : index
    %c0_12 = arith.constant 0 : index
    %c0_13 = arith.constant 0 : index
    %30 = vector.load %arg3[%c1, %c0_12, %c0_13] : memref<2x8x128xf32, #tpu.memory_space<vmem>>, vector<1x8x128xf32>
    %31 = vector.shape_cast %30 : vector<1x8x128xf32> to vector<8x128xf32>
    %32 = arith.addf %31, %23 : vector<8x128xf32>
    %c1_14 = arith.constant 1 : index
    %c0_15 = arith.constant 0 : index
    %c0_16 = arith.constant 0 : index
    %33 = vector.load %arg3[%c1_14, %c0_15, %c0_16] : memref<2x8x128xf32, #tpu.memory_space<vmem>>, vector<1x8x128xf32>
    %34 = vector.shape_cast %33 : vector<1x8x128xf32> to vector<8x128xf32>
    %35 = vector.shape_cast %32 : vector<8x128xf32> to vector<1x8x128xf32>
    tpu.vector_store %arg3[%c1_14, %c0_15, %c0_16], %35 {strides = array<i32>} : memref<2x8x128xf32, #tpu.memory_space<vmem>>, vector<1x8x128xf32>,
    return
  }
  func.func @transform_0(%arg0: i32) -> (i32, i32) {
    %c0_i32 = arith.constant 0 : i32
    %c0_i32_0 = arith.constant 0 : i32
    return %arg0, %c0_i32 : i32, i32
  }
  func.func @transform_1(%arg0: i32) -> (i32, i32) {
    %c0_i32 = arith.constant 0 : i32
    %c0_i32_0 = arith.constant 0 : i32
    return %arg0, %c0_i32 : i32, i32
  }
  func.func @transform_2(%arg0: i32) -> (i32, i32, i32) {
    %c0_i32 = arith.constant 0 : i32
    %c0_i32_0 = arith.constant 0 : i32
    %c0_i32_1 = arith.constant 0 : i32
    %c0_i32_2 = arith.constant 0 : i32
    return %c0_i32, %c0_i32_0, %c0_i32_1 : i32, i32, i32
  }
}

</mosaic_0001>

<llo_original>
// kernel: dice_loss.1
$region0: #{dice_loss.1}
  #allocation0 [shape = 'u32[]', space=smem, size = 0x4, offset = 0x4, fixed_abs, tag = 'smem constant byte address 0x4 - core index']
  #allocation1 [shape = 'u32[144,128]{1,0:T(1,128)}', space=vmem, size = 0x12000, scoped, tag = 'internal scratch']
  %s0 = inlined_call_operand.vmem [shape: f32[16,128], index: 0, kind: input, shape index: {}]
  %s1 = inlined_call_operand.vmem [shape: f32[16,128], index: 1, kind: input, shape index: {}]
  %s2 = inlined_call_operand.vmem [shape: f32[2,8,128], index: 2, kind: output, shape index: {}]
  %s3 = sld [smem:[#allocation0]]
  $region22: #{dice_loss.1} parent=0
    _
  %s5 = ssub.s32 1, %s3
  %s6 = scalar_select 0, %s5, %s3
  // Predicated region
  $region2: #{dice_loss.1} parent=0 // pred_check
    _
  $region3: #{dice_loss.1} parent=0 // pred_check_branch
    %8 = sbr.rel (0) target = $region5
  $region4: #{dice_loss.1} parent=0 // pred_region
    _
  $region5: #{dice_loss.1} parent=0 // pred_fallthru
    _
  // Predicated region
  $region6: #{dice_loss.1} parent=0 // pred_check
    _
  $region7: #{dice_loss.1} parent=0 // pred_check_branch
    %10 = sbr.rel (0) target = $region9
  $region8: #{dice_loss.1} parent=0 // pred_region
    _
  $region9: #{dice_loss.1} parent=0 // pred_fallthru
    _
  %p11 = scmp.eq.s32.totalorder 0, 0
  // Predicated region
  $region10: #{dice_loss.1} parent=0 // pred_check
    %p12 = pneg %p11
  $region11: #{dice_loss.1} parent=0 // pred_check_branch
    %14 = sbr.rel (%p12) target = $region13
  $region12: #{dice_loss.1} parent=0 // pred_region
    %15 = vst [vmem:[%s2] sm:$0xff] 0.0
    %16 = vst [vmem:[%s2 + $0x8] sm:$0xff] 0.0
  $region13: #{dice_loss.1} parent=0 // pred_fallthru
    _
  %v17 = vld [vmem:[%s0] sm:$0xff]
  %v18 = vld [vmem:[%s1] sm:$0xff]
  %v19 = vmul.f32 %v17, %v18
  %v20 = vadd.f32 %v19, 0.0
  %v21 = vadd.f32 %v17, %v18
  %v22 = vadd.f32 %v21, 0.0
  %s23 = scalar_lea.vmem %s0, 8
  %v24 = vld [vmem:[%s23] sm:$0xff]
  %s25 = scalar_lea.vmem %s1, 8
  %v26 = vld [vmem:[%s25] sm:$0xff]
  %v27 = vmul.f32 %v24, %v26
  %v28 = vadd.f32 %v20, %v27
  %v29 = vadd.f32 %v24, %v26
  %v30 = vadd.f32 %v22, %v29
  %v31 = vld [vmem:[%s2] sm:$0xff]
  %v32 = vadd.f32 %v31, %v28
  %33 = vst [vmem:[%s2] sm:$0xff] %v32
  %s34 = scalar_lea.vmem %s2, 8
  %v35 = vld [vmem:[%s34] sm:$0xff]
  %v36 = vadd.f32 %v35, %v30
  %37 = vst [vmem:[%s34] sm:$0xff] %v36
  // Predicated region
  $region14: #{dice_loss.1} parent=0 // pred_check
    _
  $region15: #{dice_loss.1} parent=0 // pred_check_branch
    %39 = sbr.rel (0) target = $region17
  $region16: #{dice_loss.1} parent=0 // pred_region
    _
  $region17: #{dice_loss.1} parent=0 // pred_fallthru
    _
  // Predicated region
  $region18: #{dice_loss.1} parent=0 // pred_check
    _
  $region19: #{dice_loss.1} parent=0 // pred_check_branch
    %41 = sbr.rel (0) target = $region21
  $region20: #{dice_loss.1} parent=0 // pred_region
    _
  $region21: #{dice_loss.1} parent=0 // pred_fallthru
    _

</llo_original>
